<compile_context>
chip_gen: v7x
topology: tpu7x:2x2x1
jax: 0.10.0
libtpu: 0.0.40
codegen_flags: <defaults>
</compile_context>

<pallas_src>
import functools

import jax
import jax.numpy as jnp
from jax import lax
from jax.experimental import pallas as pl
from jax.experimental.pallas import tpu as pltpu

LANE = 128


def _cdiv(a, b):
    return -(-a // b)


def _dice_sums_kernel(pred_ref, gt_ref, out_ref, acc_ref, *,
                      num_class, rows_per_block, rows_in_tail,
                      steps_per_chunk, num_chunks, tail_mask, lane_sentinel):
    """Accumulate per-class [intersect, z_sum, y_sum] lane-partial sums.

    pred_ref: (1, C, TS, 128) logits tile (native dtype, cast to f32 here)
    gt_ref:   (1, TS, 128)    integer class ids (any int dtype)
    out_ref:  (1, 1, 3, C, 128) f32 per-(batch, chunk) result, written once
    acc_ref:  (3, C, 128)     f32 VMEM accumulator, resident across t steps
    """
    p_idx = pl.program_id(1)
    t = pl.program_id(2)

    @pl.when(t == 0)
    def _():
        acc_ref[...] = jnp.zeros_like(acc_ref)

    logits = pred_ref[0].astype(jnp.float32)      # (C, TS, 128)
    g = gt_ref[0].astype(jnp.int32)               # (TS, 128)

    def accumulate(valid):
        # valid: None, or a bool pixel-validity mask of shape (TS,1)/(TS,128).
        if valid is None:
            x = logits
        else:
            # OOB block contents are unspecified (could be Inf/NaN): neutralize
            # the logits BEFORE max/exp so garbage cannot poison the softmax.
            x = jnp.where(valid[None], logits, 0.0)
        # Stable softmax over the leading class axis: elementwise over C fully
        # packed (TS,128) slabs -- VPU/EUP only, no cross-lane reductions.
        m = jnp.max(x, axis=0, keepdims=True)
        e = jnp.exp(x - m)
        denom = jnp.sum(e, axis=0, keepdims=True)
        r = pl.reciprocal(denom, approx=True)
        r = r * (2.0 - denom * r)                 # one Newton step -> ~exact
        sm = e * r                                # (C, TS, 128)

        vf = None if valid is None else valid.astype(jnp.float32)
        inter, zs, ys = [], [], []
        for c in range(num_class):                # unrolled (C is tiny/static)
            sm_c = sm[c]                          # (TS, 128)
            oh = (g == c).astype(jnp.float32)     # (TS, 128)
            if vf is None:
                zs.append(jnp.sum(sm_c, axis=0, keepdims=True))
            else:
                oh = oh * vf
                zs.append(jnp.sum(sm_c * vf, axis=0, keepdims=True))
            inter.append(jnp.sum(sm_c * oh, axis=0, keepdims=True))
            ys.append(jnp.sum(oh, axis=0, keepdims=True))
        # Lane-preserving partial reductions only (sublane axis collapses).
        acc_ref[0] += jnp.concatenate(inter, axis=0)   # intersect (C, 128)
        acc_ref[1] += jnp.concatenate(zs, axis=0)      # z_sum     (C, 128)
        acc_ref[2] += jnp.concatenate(ys, axis=0)      # y_sum     (C, 128)

    if not tail_mask:
        accumulate(None)
    else:
        is_tail = jnp.logical_and(p_idx == num_chunks - 1,
                                  t == steps_per_chunk - 1)

        @pl.when(jnp.logical_not(is_tail))
        def _():
            accumulate(None)                      # fast path: no masking cost

        @pl.when(is_tail)
        def _():
            row_ids = lax.broadcasted_iota(jnp.int32, (rows_per_block, 1), 0)
            valid = row_ids < rows_in_tail        # rows past the array end
            if lane_sentinel:
                # lane-padded fallback: padded pixels carry gt == num_class.
                # (Real labels >= num_class in this block would also be
                #  excluded from z_sum, unlike PyTorch -- labels are assumed
                #  to be in {0..num_class-1}.)
                valid = jnp.logical_and(valid, g < num_class)
            accumulate(valid)

    # Single lane-dense flush per (batch, chunk); no per-step narrow RMW.
    @pl.when(t == steps_per_chunk - 1)
    def _():
        out_ref[0, 0] = acc_ref[...]


def dice_loss(pred_nchw, gt_n1hw, *, max_rows_per_step=2048,
              num_spatial_chunks=None):
    """Forward pass of DiceLoss. pred: (B, C, H, W) float, gt: (B, 1, H, W) int."""
    B, C, H, W = pred_nchw.shape
    N = H * W

    # Metadata-only reshapes (no HBM copy) to the lane-dense layout.
    pred_flat = pred_nchw.reshape(B, C, N)        # keep native dtype (bf16 OK)
    gt_flat = gt_n1hw.reshape(B, N)
    if not jnp.issubdtype(gt_flat.dtype, jnp.integer):
        gt_flat = gt_flat.astype(jnp.int32)

    lane_ragged = (N % LANE) != 0
    if lane_ragged:
        # Rare fallback: the (rows, 128) re-layout requires N % 128 == 0.
        # Pad the minimum (< 128 px); padded gt carries the sentinel id C.
        pad = LANE - (N % LANE)
        pred_flat = jnp.pad(pred_flat, ((0, 0), (0, 0), (0, pad)))
        gt_flat = jnp.pad(gt_flat, ((0, 0), (0, pad)), constant_values=C)
    R = pred_flat.shape[-1] // LANE               # rows of 128 pixels
    pred_r = pred_flat.reshape(B, C, R, LANE)
    gt_r = gt_flat.reshape(B, R, LANE)

    # Row-tile granularity from dtype packing (f32: 8, bf16: 16, int8: 32).
    def _sub(dt):
        return {4: 8, 2: 16, 1: 32}.get(jnp.dtype(dt).itemsize, 8)
    sub = max(_sub(pred_r.dtype), _sub(gt_r.dtype))

    ts_cap = max(sub, (max_rows_per_step // sub) * sub)
    TS = R if R <= ts_cap else ts_cap             # ==R: block equals full dim
    n_blocks = _cdiv(R, TS)
    if B == 1 and n_blocks == 1 and R >= 2 * sub:
        # Single-block, single-batch case: split rows so megacore (v7x) and
        # DMA/compute pipelining have something to overlap.
        TS = _cdiv(_cdiv(R, 2), sub) * sub
        n_blocks = _cdiv(R, TS)

    if num_spatial_chunks is None:
        P = 2 if (B == 1 and n_blocks >= 2 and n_blocks % 2 == 0) else 1
    else:
        P = num_spatial_chunks if n_blocks % num_spatial_chunks == 0 else 1
    spc = n_blocks // P                           # row blocks per chunk

    rows_in_tail = R - (n_blocks - 1) * TS
    tail_mask = lane_ragged or (rows_in_tail != TS)

    kernel = functools.partial(
        _dice_sums_kernel,
        num_class=C,
        rows_per_block=TS,
        rows_in_tail=rows_in_tail,
        steps_per_chunk=spc,
        num_chunks=P,
        tail_mask=tail_mask,
        lane_sentinel=lane_ragged,
    )

    sums = pl.pallas_call(
        kernel,
        out_shape=jax.ShapeDtypeStruct((B, P, 3, C, LANE), jnp.float32),
        grid_spec=pltpu.PrefetchScalarGridSpec(
            num_scalar_prefetch=0,
            grid=(B, P, spc),
            in_specs=[
                pl.BlockSpec((1, C, TS, LANE),
                             lambda b, p, t, spc=spc: (b, 0, p * spc + t, 0)),
                pl.BlockSpec((1, TS, LANE),
                             lambda b, p, t, spc=spc: (b, p * spc + t, 0)),
            ],
            out_specs=pl.BlockSpec((1, 1, 3, C, LANE),
                                   lambda b, p, t: (b, p, 0, 0, 0)),
            scratch_shapes=[pltpu.VMEM((3, C, LANE), jnp.float32)],
        ),
        compiler_params=pltpu.CompilerParams(
            # batch + spatial-chunk axes parallel (both TCs on v7x); the row
            # axis is a reduction into the resident accumulator -> arbitrary.
            dimension_semantics=("parallel", "parallel", "arbitrary"),
        ),
    )(pred_r, gt_r)

    # Tiny JAX glue: collapse batch/chunk/lane partials into the scalar loss.
    per_class = jnp.sum(sums, axis=(0, 1, 4))     # (3, C)
    intersect, z_sum, y_sum = per_class[0], per_class[1], per_class[2]
    smooth = 1e-5                                 # forward() hard-codes 1e-5
    dice = (2.0 * intersect + smooth) / (z_sum + y_sum + smooth)
    return 1.0 - jnp.sum(dice) / C


def _reference_dice_loss(pred, gt):
    """Pure-JAX reference mirroring the PyTorch forward exactly."""
    sm = jax.nn.softmax(pred.astype(jnp.float32), axis=1)
    C = pred.shape[1]
    smooth = 1e-5
    loss = 0.0
    for i in range(C):
        lab = (gt[:, 0] == i).astype(jnp.float32)
        intersect = jnp.sum(sm[:, i] * lab)
        z = jnp.sum(sm[:, i])
        y = jnp.sum(lab)
        loss += (2.0 * intersect + smooth) / (z + y + smooth)
    return 1.0 - loss / C


if __name__ == "__main__":
    key = jax.random.PRNGKey(0)

    def _check(B, H, W, *, max_rows_per_step=2048, seed_offset=0, tol=1e-3):
        C = 3
        k_pred, k_gt = jax.random.split(jax.random.fold_in(key, seed_offset))
        pred = jax.random.normal(k_pred, (B, C, H, W), dtype=jnp.float32)
        # gt produced narrow at the source (class ids fit in int8): 1 B/px of
        # HBM traffic instead of 4 B/px for the bandwidth-bound kernel.
        gt = jax.random.randint(k_gt, (B, 1, H, W), 0, C,
                                dtype=jnp.int32).astype(jnp.int8)
        out = jax.block_until_ready(
            dice_loss(pred, gt, max_rows_per_step=max_rows_per_step))
        ref = jax.block_until_ready(_reference_dice_loss(pred, gt))
        assert bool(jnp.isfinite(out)), out
        assert float(jnp.abs(out - ref)) < tol, (B, H, W, float(out), float(ref))
        return out

    # 1) main fast path: lane-aligned, single row block per batch element.
    _check(2, 16, 16)
    # 2) ragged row tail + spatial megacore split (B=1): R=40 rows, TS=32, P=2.
    _check(1, 128, 40, max_rows_per_step=8, seed_offset=1)
    # 3) lane-ragged fallback (H*W not a multiple of 128).
    _check(2, 10, 10, seed_offset=2)

    print("KERNEL_OK")
</pallas_src>

<mosaic_0001>
module attributes {stable_mosaic.version = 11 : i64} {
  func.func @_dice_sums_kernel(%arg0: i32, %arg1: i32, %arg2: i32, %arg3: memref<1x3x2x128xf32, #tpu.memory_space<vmem>>, %arg4: memref<1x2x128xi8, #tpu.memory_space<vmem>>, %arg5: memref<1x1x3x3x128xf32, #tpu.memory_space<vmem>>, %arg6: memref<3x3x128xf32, #tpu.memory_space<vmem>>) attributes {dimension_semantics = [#tpu.dimension_semantics<parallel>, #tpu.dimension_semantics<parallel>, #tpu.dimension_semantics<arbitrary>], iteration_bounds = array<i64: 2, 1, 1>, scalar_prefetch = 0 : i64, scratch_operands = 1 : i64, tpu.core_type = #tpu.core_type<tc>, window_params = [{transform_indices = @transform_0, window_bounds = array<i64: 1, 3, 2, 128>}, {transform_indices = @transform_1, window_bounds = array<i64: 1, 2, 128>}, {transform_indices = @transform_2, window_bounds = array<i64: 1, 1, 3, 3, 128>}]} {
    %c0_i32 = arith.constant 0 : i32
    %0 = arith.cmpi eq, %arg2, %c0_i32 : i32
    %1 = arith.extui %0 : i1 to i32
    %c0_i32_0 = arith.constant 0 : i32
    %2 = arith.cmpi ne, %1, %c0_i32_0 : i32
    scf.if %2 {
      %cst_37 = arith.constant 0.000000e+00 : f32
      %85 = vector.broadcast %cst_37 : f32 to vector<3x3x128xf32>
      %c0_38 = arith.constant 0 : index
      %c0_39 = arith.constant 0 : index
      %c0_40 = arith.constant 0 : index
      %86 = vector.load %arg6[%c0_38, %c0_39, %c0_40] : memref<3x3x128xf32, #tpu.memory_space<vmem>>, vector<3x3x128xf32>
      tpu.vector_store %arg6[%c0_38, %c0_39, %c0_40], %85 {strides = array<i32>} : memref<3x3x128xf32, #tpu.memory_space<vmem>>, vector<3x3x128xf32>,
    } else {
    }
    %c0 = arith.constant 0 : index
    %c0_1 = arith.constant 0 : index
    %c0_2 = arith.constant 0 : index
    %c0_3 = arith.constant 0 : index
    %3 = vector.load %arg3[%c0, %c0_1, %c0_2, %c0_3] : memref<1x3x2x128xf32, #tpu.memory_space<vmem>>, vector<1x3x2x128xf32>
    %4 = vector.shape_cast %3 : vector<1x3x2x128xf32> to vector<3x2x128xf32>
    %c0_4 = arith.constant 0 : index
    %c0_5 = arith.constant 0 : index
    %c0_6 = arith.constant 0 : index
    %5 = vector.load %arg4[%c0_4, %c0_5, %c0_6] : memref<1x2x128xi8, #tpu.memory_space<vmem>>, vector<1x2x128xi8>
    %6 = vector.shape_cast %5 : vector<1x2x128xi8> to vector<2x128xi8>
    %7 = arith.extsi %6 : vector<2x128xi8> to vector<2x128xi32>
    %cst = arith.constant dense<0xFF800000> : vector<2x128xf32>
    %8 = vector.multi_reduction <maximumf>, %4, %cst [0] : vector<3x2x128xf32> to vector<2x128xf32>
    %9 = vector.shape_cast %8 : vector<2x128xf32> to vector<1x2x128xf32>
    %10 = vector.broadcast %9 : vector<1x2x128xf32> to vector<3x2x128xf32>
    %11 = arith.subf %4, %10 : vector<3x2x128xf32>
    %12 = math.exp %11 : vector<3x2x128xf32>
    %cst_7 = arith.constant dense<0.000000e+00> : vector<2x128xf32>
    %13 = vector.multi_reduction <add>, %12, %cst_7 [0] : vector<3x2x128xf32> to vector<2x128xf32>
    %14 = vector.shape_cast %13 : vector<2x128xf32> to vector<1x2x128xf32>
    %15 = tpu.reciprocal %14 {approx = true} : vector<1x2x128xf32> -> vector<1x2x128xf32>
    %16 = arith.mulf %14, %15 : vector<1x2x128xf32>
    %cst_8 = arith.constant 2.000000e+00 : f32
    %17 = vector.broadcast %cst_8 : f32 to vector<1x2x128xf32>
    %18 = arith.subf %17, %16 : vector<1x2x128xf32>
    %19 = arith.mulf %15, %18 : vector<1x2x128xf32>
    %20 = vector.broadcast %19 : vector<1x2x128xf32> to vector<3x2x128xf32>
    %21 = arith.mulf %12, %20 : vector<3x2x128xf32>
    %22 = vector.extract_strided_slice %21 {offsets = [0, 0, 0], sizes = [1, 2, 128], strides = [1, 1, 1]} : vector<3x2x128xf32> to vector<1x2x128xf32>
    %23 = vector.shape_cast %22 : vector<1x2x128xf32> to vector<2x128xf32>
    %c0_i32_9 = arith.constant 0 : i32
    %24 = vector.broadcast %c0_i32_9 : i32 to vector<2x128xi32>
    %25 = arith.cmpi eq, %7, %24 : vector<2x128xi32>
    %26 = arith.extui %25 : vector<2x128xi1> to vector<2x128xi32>
    %27 = arith.sitofp %26 : vector<2x128xi32> to vector<2x128xf32>
    %cst_10 = arith.constant dense<0.000000e+00> : vector<128xf32>
    %28 = vector.multi_reduction <add>, %23, %cst_10 [0] : vector<2x128xf32> to vector<128xf32>
    %29 = vector.shape_cast %28 : vector<128xf32> to vector<1x128xf32>
    %30 = arith.mulf %23, %27 : vector<2x128xf32>
    %cst_11 = arith.constant dense<0.000000e+00> : vector<128xf32>
    %31 = vector.multi_reduction <add>, %30, %cst_11 [0] : vector<2x128xf32> to vector<128xf32>
    %32 = vector.shape_cast %31 : vector<128xf32> to vector<1x128xf32>
    %cst_12 = arith.constant dense<0.000000e+00> : vector<128xf32>
    %33 = vector.multi_reduction <add>, %27, %cst_12 [0] : vector<2x128xf32> to vector<128xf32>
    %34 = vector.shape_cast %33 : vector<128xf32> to vector<1x128xf32>
    %35 = vector.extract_strided_slice %21 {offsets = [1, 0, 0], sizes = [1, 2, 128], strides = [1, 1, 1]} : vector<3x2x128xf32> to vector<1x2x128xf32>
    %36 = vector.shape_cast %35 : vector<1x2x128xf32> to vector<2x128xf32>
    %c1_i32 = arith.constant 1 : i32
    %37 = vector.broadcast %c1_i32 : i32 to vector<2x128xi32>
    %38 = arith.cmpi eq, %7, %37 : vector<2x128xi32>
    %39 = arith.extui %38 : vector<2x128xi1> to vector<2x128xi32>
    %40 = arith.sitofp %39 : vector<2x128xi32> to vector<2x128xf32>
    %cst_13 = arith.constant dense<0.000000e+00> : vector<128xf32>
    %41 = vector.multi_reduction <add>, %36, %cst_13 [0] : vector<2x128xf32> to vector<128xf32>
    %42 = vector.shape_cast %41 : vector<128xf32> to vector<1x128xf32>
    %43 = arith.mulf %36, %40 : vector<2x128xf32>
    %cst_14 = arith.constant dense<0.000000e+00> : vector<128xf32>
    %44 = vector.multi_reduction <add>, %43, %cst_14 [0] : vector<2x128xf32> to vector<128xf32>
    %45 = vector.shape_cast %44 : vector<128xf32> to vector<1x128xf32>
    %cst_15 = arith.constant dense<0.000000e+00> : vector<128xf32>
    %46 = vector.multi_reduction <add>, %40, %cst_15 [0] : vector<2x128xf32> to vector<128xf32>
    %47 = vector.shape_cast %46 : vector<128xf32> to vector<1x128xf32>
    %48 = vector.extract_strided_slice %21 {offsets = [2, 0, 0], sizes = [1, 2, 128], strides = [1, 1, 1]} : vector<3x2x128xf32> to vector<1x2x128xf32>
    %49 = vector.shape_cast %48 : vector<1x2x128xf32> to vector<2x128xf32>
    %c2_i32 = arith.constant 2 : i32
    %50 = vector.broadcast %c2_i32 : i32 to vector<2x128xi32>
    %51 = arith.cmpi eq, %7, %50 : vector<2x128xi32>
    %52 = arith.extui %51 : vector<2x128xi1> to vector<2x128xi32>
    %53 = arith.sitofp %52 : vector<2x128xi32> to vector<2x128xf32>
    %cst_16 = arith.constant dense<0.000000e+00> : vector<128xf32>
    %54 = vector.multi_reduction <add>, %49, %cst_16 [0] : vector<2x128xf32> to vector<128xf32>
    %55 = vector.shape_cast %54 : vector<128xf32> to vector<1x128xf32>
    %56 = arith.mulf %49, %53 : vector<2x128xf32>
    %cst_17 = arith.constant dense<0.000000e+00> : vector<128xf32>
    %57 = vector.multi_reduction <add>, %56, %cst_17 [0] : vector<2x128xf32> to vector<128xf32>
    %58 = vector.shape_cast %57 : vector<128xf32> to vector<1x128xf32>
    %cst_18 = arith.constant dense<0.000000e+00> : vector<128xf32>
    %59 = vector.multi_reduction <add>, %53, %cst_18 [0] : vector<2x128xf32> to vector<128xf32>
    %60 = vector.shape_cast %59 : vector<128xf32> to vector<1x128xf32>
    %c0_19 = arith.constant 0 : index
    %c0_20 = arith.constant 0 : index
    %c0_21 = arith.constant 0 : index
    %61 = vector.load %arg6[%c0_19, %c0_20, %c0_21] : memref<3x3x128xf32, #tpu.memory_space<vmem>>, vector<1x3x128xf32>
    %62 = vector.shape_cast %61 : vector<1x3x128xf32> to vector<3x128xf32>
    %63 = tpu.concatenate %32, %45, %58 in 0 : vector<1x128xf32>, vector<1x128xf32>, vector<1x128xf32> -> vector<3x128xf32>
    %64 = arith.addf %62, %63 : vector<3x128xf32>
    %c0_22 = arith.constant 0 : index
    %c0_23 = arith.constant 0 : index
    %c0_24 = arith.constant 0 : index
    %65 = vector.load %arg6[%c0_22, %c0_23, %c0_24] : memref<3x3x128xf32, #tpu.memory_space<vmem>>, vector<1x3x128xf32>
    %66 = vector.shape_cast %65 : vector<1x3x128xf32> to vector<3x128xf32>
    %67 = vector.shape_cast %64 : vector<3x128xf32> to vector<1x3x128xf32>
    tpu.vector_store %arg6[%c0_22, %c0_23, %c0_24], %67 {strides = array<i32>} : memref<3x3x128xf32, #tpu.memory_space<vmem>>, vector<1x3x128xf32>,
    %c1 = arith.constant 1 : index
    %c0_25 = arith.constant 0 : index
    %c0_26 = arith.constant 0 : index
    %68 = vector.load %arg6[%c1, %c0_25, %c0_26] : memref<3x3x128xf32, #tpu.memory_space<vmem>>, vector<1x3x128xf32>
    %69 = vector.shape_cast %68 : vector<1x3x128xf32> to vector<3x128xf32>
    %70 = tpu.concatenate %29, %42, %55 in 0 : vector<1x128xf32>, vector<1x128xf32>, vector<1x128xf32> -> vector<3x128xf32>
    %71 = arith.addf %69, %70 : vector<3x128xf32>
    %c1_27 = arith.constant 1 : index
    %c0_28 = arith.constant 0 : index
    %c0_29 = arith.constant 0 : index
    %72 = vector.load %arg6[%c1_27, %c0_28, %c0_29] : memref<3x3x128xf32, #tpu.memory_space<vmem>>, vector<1x3x128xf32>
    %73 = vector.shape_cast %72 : vector<1x3x128xf32> to vector<3x128xf32>
    %74 = vector.shape_cast %71 : vector<3x128xf32> to vector<1x3x128xf32>
    tpu.vector_store %arg6[%c1_27, %c0_28, %c0_29], %74 {strides = array<i32>} : memref<3x3x128xf32, #tpu.memory_space<vmem>>, vector<1x3x128xf32>,
    %c2 = arith.constant 2 : index
    %c0_30 = arith.constant 0 : index
    %c0_31 = arith.constant 0 : index
    %75 = vector.load %arg6[%c2, %c0_30, %c0_31] : memref<3x3x128xf32, #tpu.memory_space<vmem>>, vector<1x3x128xf32>
    %76 = vector.shape_cast %75 : vector<1x3x128xf32> to vector<3x128xf32>
    %77 = tpu.concatenate %34, %47, %60 in 0 : vector<1x128xf32>, vector<1x128xf32>, vector<1x128xf32> -> vector<3x128xf32>
    %78 = arith.addf %76, %77 : vector<3x128xf32>
    %c2_32 = arith.constant 2 : index
    %c0_33 = arith.constant 0 : index
    %c0_34 = arith.constant 0 : index
    %79 = vector.load %arg6[%c2_32, %c0_33, %c0_34] : memref<3x3x128xf32, #tpu.memory_space<vmem>>, vector<1x3x128xf32>
    %80 = vector.shape_cast %79 : vector<1x3x128xf32> to vector<3x128xf32>
    %81 = vector.shape_cast %78 : vector<3x128xf32> to vector<1x3x128xf32>
    tpu.vector_store %arg6[%c2_32, %c0_33, %c0_34], %81 {strides = array<i32>} : memref<3x3x128xf32, #tpu.memory_space<vmem>>, vector<1x3x128xf32>,
    %c0_i32_35 = arith.constant 0 : i32
    %82 = arith.cmpi eq, %arg2, %c0_i32_35 : i32
    %83 = arith.extui %82 : i1 to i32
    %c0_i32_36 = arith.constant 0 : i32
    %84 = arith.cmpi ne, %83, %c0_i32_36 : i32
    scf.if %84 {
      %c0_37 = arith.constant 0 : index
      %c0_38 = arith.constant 0 : index
      %c0_39 = arith.constant 0 : index
      %85 = vector.load %arg6[%c0_37, %c0_38, %c0_39] : memref<3x3x128xf32, #tpu.memory_space<vmem>>, vector<3x3x128xf32>
      %c0_40 = arith.constant 0 : index
      %c0_41 = arith.constant 0 : index
      %c0_42 = arith.constant 0 : index
      %c0_43 = arith.constant 0 : index
      %c0_44 = arith.constant 0 : index
      %86 = vector.load %arg5[%c0_40, %c0_41, %c0_42, %c0_43, %c0_44] : memref<1x1x3x3x128xf32, #tpu.memory_space<vmem>>, vector<1x1x3x3x128xf32>
      %87 = vector.shape_cast %86 : vector<1x1x3x3x128xf32> to vector<3x3x128xf32>
      %88 = vector.shape_cast %85 : vector<3x3x128xf32> to vector<1x1x3x3x128xf32>
      tpu.vector_store %arg5[%c0_40, %c0_41, %c0_42, %c0_43, %c0_44], %88 {strides = array<i32>} : memref<1x1x3x3x128xf32, #tpu.memory_space<vmem>>, vector<1x1x3x3x128xf32>,
    } else {
    }
    return
  }
  func.func @transform_0(%arg0: i32, %arg1: i32, %arg2: i32) -> (i32, i32, i32, i32) {
    %c1_i32 = arith.constant 1 : i32
    %0 = arith.muli %arg1, %c1_i32 : i32
    %1 = arith.addi %0, %arg2 : i32
    %c0_i32 = arith.constant 0 : i32
    %c0_i32_0 = arith.constant 0 : i32
    %c0_i32_1 = arith.constant 0 : i32
    return %arg0, %c0_i32, %1, %c0_i32_0 : i32, i32, i32, i32
  }
  func.func @transform_1(%arg0: i32, %arg1: i32, %arg2: i32) -> (i32, i32, i32) {
    %c1_i32 = arith.constant 1 : i32
    %0 = arith.muli %arg1, %c1_i32 : i32
    %1 = arith.addi %0, %arg2 : i32
    %c0_i32 = arith.constant 0 : i32
    %c0_i32_0 = arith.constant 0 : i32
    return %arg0, %1, %c0_i32 : i32, i32, i32
  }
  func.func @transform_2(%arg0: i32, %arg1: i32, %arg2: i32) -> (i32, i32, i32, i32, i32) {
    %c0_i32 = arith.constant 0 : i32
    %c0_i32_0 = arith.constant 0 : i32
    %c0_i32_1 = arith.constant 0 : i32
    %c0_i32_2 = arith.constant 0 : i32
    return %arg0, %arg1, %c0_i32, %c0_i32_0, %c0_i32_1 : i32, i32, i32, i32, i32
  }
}

</mosaic_0001>

<llo_original>
// kernel: tpu_custom_call.1
$region0: #{tpu_custom_call.1}
  #allocation0 [shape = 'u32[]', space=smem, size = 0x4, offset = 0x4, fixed_abs, tag = 'smem constant byte address 0x4 - core index']
  #allocation1 [shape = 'u32[144,128]{1,0:T(1,128)}', space=vmem, size = 0x12000, scoped, tag = 'internal scratch']
  #allocation2 [shape = 'f32[3,3,128]{2,1,0:T(4,128)}', space=vmem, size = 0x1800, scoped, tag = 'scratch operand']
  %s0 = inlined_call_operand.hbm [shape: f32[2,3,2,128], index: 0, kind: input, shape index: {}]
  %s1 = inlined_call_operand.vmem [shape: s8[2,2,128], index: 1, kind: input, shape index: {}]
  %s2 = inlined_call_operand.vmem [shape: f32[2,1,3,3,128], index: 2, kind: output, shape index: {}]
  %s3 = sld [smem:[#allocation0]]
  $region53: #{tpu_custom_call.1} parent=0
    _
  %s5 = ssub.s32 1, %s3
  %s6 = scalar_select 0, %s5, %s3
  $region1: #{tpu_custom_call.1} parent=0
    #allocation3 [shape = 'u8[6144]{0}', space=vmem, size = 0x1800, scoped, tag = 'input window, operand 0']
    #allocation4 [shape = 's32[2]{0}', space=sflag, size = 0x8, scoped, tag = 'scoped memory for tpu_custom_call.1']
    %7 = vsyncpa [#allocation4], 0
    %s8 = scalar_lea.sflag [#allocation4], 1
    %9 = vsyncpa %s8, 0
    loop: start=0, step=1, limit=4
    $region2: #{tpu_custom_call.1} parent=1 // loop_pre_header
      _
    $region3: #{tpu_custom_call.1} parent=1 // loop_header
      %s11 = sphi 0, %s15
      %p12 = scmp.ge.s32.totalorder %s11, 4
      %s18 = sphi 0, %s37
      %s19 = sphi 0, %s33
      %s20 = sphi 0, %s29
      %s21 = sphi 0, %s18
      %s22 = sphi 0, %s19
      %s23 = sphi 0, %s20
      %s24 = sphi 0, %s21
      %s25 = sphi 0, %s22
      %s26 = sphi 0, %s23
      %s44 = sphi 0, %s46
      %s47 = sphi 0, %s44
      %s48 = sphi 0, %s47
      %s64 = sphi 0, %s48
      %s74 = sphi 0, %s76
      %s77 = sphi 0, %s74
      %s78 = sphi 0, %s77
      %s94 = sphi 0, %s78
      %s102 = sphi 0, %s104
      %s105 = sphi 0, %s102
      %s106 = sphi 0, %s105
      %s122 = sphi 0, %s106
    $region4: #{tpu_custom_call.1} parent=1 // loop_header_branch
      %14 = sbr.rel (%p12) target = $region8
    $region5: #{tpu_custom_call.1} parent=1 // loop_body
      %s16 = ssub.s32 %s11, 1
      %s17 = ssub.s32 %s11, 2
      %s27 = sadd.s32 1, %s20
      %p28 = scmp.ge.s32.totalorder %s27, 1
      %s29 = scalar_select %p28, 0, %s27
      %s30 = sadd.s32 1, %s19
      %s31 = scalar_select %p28, %s30, %s19
      %p32 = scmp.ge.s32.totalorder %s31, 1
      %s33 = scalar_select %p32, 0, %s31
      %s34 = sadd.s32 1, %s18
      %s35 = scalar_select %p32, %s34, %s18
      %p36 = scmp.ge.s32.totalorder %s35, 2
      %s37 = scalar_select %p36, 0, %s35
      %s38 = sadd.s32 %s19, %s20
      %s39 = sadd.s32 %s33, %s29
      %s40 = ssub.s32 %s18, %s37
      %s41 = ssub.s32 %s38, %s39
      %s42 = sor.u32 %s40, %s41
      %p43 = scmp.eq.s32.totalorder %s42, 0
      %s45 = sadd.s32 %s44, 1
      %s46 = scalar_select %p43, %s44, %s45
      %p49 = pneg %p43
      %p50 = scmp.eq.s32.totalorder %s11, 1
      %p51 = por %p49, %p50
      %p52 = scmp.ne.s32.totalorder %s44, %s47
      %p53 = scmp.eq.s32.totalorder %s11, 0
      %p54 = por %p52, %p53
      %p55 = scmp.ne.s32.totalorder %s44, %s47
      %p56 = scmp.eq.s32.totalorder %s16, 1
      %p57 = por %p55, %p56
      %p58 = scmp.ne.s32.totalorder %s47, %s48
      %p59 = scmp.eq.s32.totalorder %s16, 0
      %p60 = por %p58, %p59
      %p61 = scmp.ne.s32.totalorder %s47, %s48
      %p62 = scmp.eq.s32.totalorder %s17, 1
      %p63 = por %p61, %p62
      %p65 = scmp.ne.s32.totalorder %s48, %s64
      %p66 = scmp.eq.s32.totalorder %s17, 0
      %p67 = por %p65, %p66
      %s68 = sadd.s32 %s19, %s20
      %s69 = sadd.s32 %s33, %s29
      %s70 = ssub.s32 %s18, %s37
      %s71 = ssub.s32 %s68, %s69
      %s72 = sor.u32 %s70, %s71
      %p73 = scmp.eq.s32.totalorder %s72, 0
      %s75 = sadd.s32 %s74, 1
      %s76 = scalar_select %p73, %s74, %s75
      %p79 = pneg %p73
      %p80 = scmp.eq.s32.totalorder %s11, 1
      %p81 = por %p79, %p80
      %p82 = scmp.ne.s32.totalorder %s74, %s77
      %p83 = scmp.eq.s32.totalorder %s11, 0
      %p84 = por %p82, %p83
      %p85 = scmp.ne.s32.totalorder %s74, %s77
      %p86 = scmp.eq.s32.totalorder %s16, 1
      %p87 = por %p85, %p86
      %p88 = scmp.ne.s32.totalorder %s77, %s78
      %p89 = scmp.eq.s32.totalorder %s16, 0
      %p90 = por %p88, %p89
      %p91 = scmp.ne.s32.totalorder %s77, %s78
      %p92 = scmp.eq.s32.totalorder %s17, 1
      %p93 = por %p91, %p92
      %p95 = scmp.ne.s32.totalorder %s78, %s94
      %p96 = scmp.eq.s32.totalorder %s17, 0
      %p97 = por %p95, %p96
      %s98 = ssub.s32 %s18, %s37
      %s99 = ssub.s32 %s19, %s33
      %s100 = sor.u32 %s98, %s99
      %p101 = scmp.eq.s32.totalorder %s100, 0
      %s103 = sadd.s32 %s102, 1
      %s104 = scalar_select %p101, %s102, %s103
      %p107 = pneg %p101
      %p108 = scmp.eq.s32.totalorder %s11, 1
      %p109 = por %p107, %p108
      %p110 = scmp.ne.s32.totalorder %s102, %s105
      %p111 = scmp.eq.s32.totalorder %s11, 0
      %p112 = por %p110, %p111
      %p113 = scmp.ne.s32.totalorder %s102, %s105
      %p114 = scmp.eq.s32.totalorder %s16, 1
      %p115 = por %p113, %p114
      %p116 = scmp.ne.s32.totalorder %s105, %s106
      %p117 = scmp.eq.s32.totalorder %s16, 0
      %p118 = por %p116, %p117
      %p119 = scmp.ne.s32.totalorder %s105, %s106
      %p120 = scmp.eq.s32.totalorder %s17, 1
      %p121 = por %p119, %p120
      %p123 = scmp.ne.s32.totalorder %s106, %s122
      %p124 = scmp.eq.s32.totalorder %s17, 0
      %p125 = por %p123, %p124
      %p126 = scmp.le.s32.totalorder 1, %s11
      %p127 = scmp.lt.s32.totalorder %s11, 3
      %p128 = pnand %p126, %p127
      %p129 = pneg %p128
      // Predicated region
      $region9: #{tpu_custom_call.1} parent=5 // pred_check
        _
      $region10: #{tpu_custom_call.1} parent=5 // pred_check_branch
        %131 = sbr.rel (%p128) target = $region12
      $region11: #{tpu_custom_call.1} parent=5 // pred_region
        %s132 = ssub.s32 %s11, 1
      $region12: #{tpu_custom_call.1} parent=5 // pred_fallthru
        _
      %p133 = scmp.lt.s32.totalorder %s11, 2
      // Predicated region
      $region13: #{tpu_custom_call.1} parent=5 // pred_check
        %p134 = pneg %p133
      $region14: #{tpu_custom_call.1} parent=5 // pred_check_branch
        %136 = sbr.rel (%p134) target = $region16
      $region15: #{tpu_custom_call.1} parent=5 // pred_region
        // Predicated region
        $region17: #{tpu_custom_call.1} parent=15 // pred_check
          %p137 = pneg %p54
        $region18: #{tpu_custom_call.1} parent=15 // pred_check_branch
          %139 = sbr.rel (%p137) target = $region20
        $region19: #{tpu_custom_call.1} parent=15 // pred_region
          %s140 = sand.u32 %s44, 1
          %s141 = scalar_lea.sflag [#allocation4], %s140
          %s142 = sand.u32 %s44, 1
          %s143 = smul.addr %s142, 6
          %s144 = scalar_lea.vmem [#allocation3], %s143
          %s145 = sadd.s32 %s19, %s20
          %s147 = ssub.s32 96, 96
          %148 = vsyncadd %s141, %s147
          %s149 = smul.addr %s18, 3
          %s150 = sadd.s32 %s145, %s149
          %s151 = smul.addr %s150, 32
          %s152 = scalar_lea.hbm %s0, %s151
          %s153 = sshll.u32 %s144, 4
          %s154 = int_to_ptr.vmem [resolvable:$true] %s153
          %159 = dma.hbm_to_vmem [thread:$0]  %s152, 96, %s154, %s141, 32, 32, 2
        $region20: #{tpu_custom_call.1} parent=15 // pred_fallthru
          _
        // Predicated region
        $region21: #{tpu_custom_call.1} parent=15 // pred_check
          %p160 = pneg %p84
        $region22: #{tpu_custom_call.1} parent=15 // pred_check_branch
          %162 = sbr.rel (%p160) target = $region24
        $region23: #{tpu_custom_call.1} parent=15 // pred_region
          %s163 = sadd.s32 %s19, %s20
          %p164 = scmp.lt.s32.totalorder %s18, 1
          %s165 = scalar_select %p164, %s18, 1
          %p166 = scmp.lt.s32.totalorder %s163, 0
          %s167 = scalar_select %p166, %s163, 0
          %s168 = sadd.s32 %s167, %s165
          %s169 = scalar_lea.vmem %s1, %s168
          %s170 = sadd.s32 %s19, %s20
        $region24: #{tpu_custom_call.1} parent=15 // pred_fallthru
          _
      $region16: #{tpu_custom_call.1} parent=5 // pred_fallthru
        _
      %p171 = scmp.le.s32.totalorder 1, %s11
      %p172 = scmp.lt.s32.totalorder %s11, 3
      %p173 = pnand %p171, %p172
      %p174 = pneg %p173
      // Predicated region
      $region25: #{tpu_custom_call.1} parent=5 // pred_check
        _
      $region26: #{tpu_custom_call.1} parent=5 // pred_check_branch
        %176 = sbr.rel (%p173) target = $region28
      $region27: #{tpu_custom_call.1} parent=5 // pred_region
        %s177 = ssub.s32 %s11, 1
        %s178 = sand.u32 %s47, 1
        %s179 = scalar_lea.sflag [#allocation4], %s178
        %s180 = sand.u32 %s47, 1
        %s181 = smul.addr %s180, 6
        %s182 = scalar_lea.vmem [#allocation3], %s181
        // Predicated region
        $region29: #{tpu_custom_call.1} parent=27 // pred_check
          %p183 = pneg %p60
        $region30: #{tpu_custom_call.1} parent=27 // pred_check_branch
          %185 = sbr.rel (%p183) target = $region32
        $region31: #{tpu_custom_call.1} parent=27 // pred_region
          %186 = dma.done %s179, 96
        $region32: #{tpu_custom_call.1} parent=27 // pred_fallthru
          _
        %s187 = sand.u32 %s47, 1
        %s188 = scalar_lea.sflag [#allocation4], %s187
        %s189 = sand.u32 %s47, 1
        %s190 = smul.addr %s189, 6
        %s191 = scalar_lea.vmem [#allocation3], %s190
        %p192 = pneg %p60
        %p193 = pneg %p57
        %s194 = sadd.s32 %s22, %s23
        %p195 = scmp.lt.s32.totalorder %s21, 1
        %s196 = scalar_select %p195, %s21, 1
        %p197 = scmp.lt.s32.totalorder %s194, 0
        %s198 = scalar_select %p197, %s194, 0
        %s199 = sadd.s32 %s198, %s196
        %s200 = scalar_lea.vmem %s1, %s199
        %p201 = pneg %p90
        %p202 = pneg %p87
        %p203 = pneg %p118
        %p204 = pneg %p115
        %p205 = scmp.lt.s32.totalorder %s21, 1
        %s206 = scalar_select %p205, %s21, 1
        %p207 = scmp.lt.s32.totalorder %s22, 0
        %s208 = scalar_select %p207, %s22, 0
        %s209 = smul.addr %s208, 3
        %s210 = smul.addr %s206, 3
        %s211 = sadd.s32 %s209, %s210
        %s212 = smul.addr %s211, 4
        %s213 = scalar_lea.vmem %s2, %s212
        %s214 = sadd.s32 %s22, %s23
        %s215 = sadd.s32 %s22, %s23
        %p216 = scmp.lt.s32.totalorder %s21, 1
        %s217 = scalar_select %p216, %s21, 1
        %p218 = scmp.lt.s32.totalorder %s215, 0
        %s219 = scalar_select %p218, %s215, 0
        %s220 = sadd.s32 %s219, %s217
        %s221 = scalar_lea.vmem %s1, %s220
        %s222 = sadd.s32 %s22, %s23
        %p223 = scmp.lt.s32.totalorder %s21, 1
        %s224 = scalar_select %p223, %s21, 1
        %p225 = scmp.lt.s32.totalorder %s22, 0
        %s226 = scalar_select %p225, %s22, 0
        %s227 = smul.addr %s226, 3
        %s228 = smul.addr %s224, 3
        %s229 = sadd.s32 %s227, %s228
        %s230 = smul.addr %s229, 4
        %s231 = scalar_lea.vmem %s2, %s230
        %p232 = scmp.eq.s32.totalorder %s23, 0
        // Predicated region
        $region33: #{tpu_custom_call.1} parent=27 // pred_check
          %p233 = pneg %p232
        $region34: #{tpu_custom_call.1} parent=27 // pred_check_branch
          %235 = sbr.rel (%p233) target = $region36
        $region35: #{tpu_custom_call.1} parent=27 // pred_region
          %236 = vst [vmem:[#allocation2] sm:$0x7] 0.0
          %237 = vst [vmem:[#allocation2 + $0x4] sm:$0x7] 0.0
          %238 = vst [vmem:[#allocation2 + $0x8] sm:$0x7] 0.0
        $region36: #{tpu_custom_call.1} parent=27 // pred_fallthru
          _
        %v239 = vld [vmem:[%s182] sm:$0x3]
        %v240 = vld [vmem:[%s182 + $0x2] sm:$0x3]
        %v241 = vld [vmem:[%s182 + $0x4] sm:$0x3]
        %v242 = vld [vmem:[%s221] sm:$0x1]
        %v243 = vunpack.c.0.s8 %v242
        %vm244 = vcmask 1041408
        %v245 = vsel %vm244, %v239, -inf
        %v246 = vsel %vm244, %v240, -inf
        %v247 = vsel %vm244, %v241, -inf
        %v248 = vmax.f32 %v245, %v246
        %v249 = vmax.f32 %v248, %v247
        %v250 = vsub.f32 %v239, %v249
        %v251 = vsub.f32 %v240, %v249
        %v252 = vsub.f32 %v241, %v249
        %v253 = vmul.f32 %v250, 1.442695
        %v254 = vpow.pop %v253
        %v255 = vmul.f32 %v251, 1.442695
        %v256 = vpow.pop %v255
        %v257 = vmul.f32 %v252, 1.442695
        %v258 = vpow.pop %v257
        %v259 = vsel %vm244, %v254, 0.0
        %v260 = vsel %vm244, %v256, 0.0
        %v261 = vadd.f32 %v259, %v260
        %v262 = vsel %vm244, %v258, 0.0
        %v263 = vadd.f32 %v261, %v262
        %v264 = vrcp.pop %v263
        %v265 = vmul.f32 %v263, %v264
        %v266 = vsub.f32 2.0, %v265
        %v267 = vmul.f32 %v264, %v266
        %v268 = vmul.f32 %v254, %v267
        %v269 = vmul.f32 %v256, %v267
        %v270 = vmul.f32 %v258, %v267
        %vm271 = vcmp.eq.s32.totalorder %v243, 0
        %v272 = vsel %vm271, 1, 0
        %v273 = vcvt.s32.f32 %v272
        %v274 = vsel %vm244, %v268, 0.0
        %v275 = vrot.slane %v274, 4
        %v276 = vadd.f32 %v274, %v275
        %v277 = vrot.slane %v276, 2
        %v278 = vadd.f32 %v276, %v277
        %v279 = vrot.slane %v278, 1
        %v280 = vadd.f32 %v278, %v279
        %v281 = vmul.f32 %v268, %v273
        %v282 = vsel %vm244, %v281, 0.0
        %v283 = vrot.slane %v282, 4
        %v284 = vadd.f32 %v282, %v283
        %v285 = vrot.slane %v284, 2
        %v286 = vadd.f32 %v284, %v285
        %v287 = vrot.slane %v286, 1
        %v288 = vadd.f32 %v286, %v287
        %v289 = vsel %vm244, %v273, 0.0
        %v290 = vrot.slane %v289, 4
        %v291 = vadd.f32 %v289, %v290
        %v292 = vrot.slane %v291, 2
        %v293 = vadd.f32 %v291, %v292
        %v294 = vrot.slane %v293, 1
        %v295 = vadd.f32 %v293, %v294
        %vm296 = vcmp.eq.s32.totalorder %v243, 1
        %v297 = vsel %vm296, 1, 0
        %v298 = vcvt.s32.f32 %v297
        %v299 = vsel %vm244, %v269, 0.0
        %v300 = vrot.slane %v299, 4
        %v301 = vadd.f32 %v299, %v300
        %v302 = vrot.slane %v301, 2
        %v303 = vadd.f32 %v301, %v302
        %v304 = vrot.slane %v303, 1
        %v305 = vadd.f32 %v303, %v304
        %v306 = vmul.f32 %v269, %v298
        %v307 = vsel %vm244, %v306, 0.0
        %v308 = vrot.slane %v307, 4
        %v309 = vadd.f32 %v307, %v308
        %v310 = vrot.slane %v309, 2
        %v311 = vadd.f32 %v309, %v310
        %v312 = vrot.slane %v311, 1
        %v313 = vadd.f32 %v311, %v312
        %v314 = vsel %vm244, %v298, 0.0
        %v315 = vrot.slane %v314, 4
        %v316 = vadd.f32 %v314, %v315
        %v317 = vrot.slane %v316, 2
        %v318 = vadd.f32 %v316, %v317
        %v319 = vrot.slane %v318, 1
        %v320 = vadd.f32 %v318, %v319
        %vm321 = vcmp.eq.s32.totalorder %v243, 2
        %v322 = vsel %vm321, 1, 0
        %v323 = vcvt.s32.f32 %v322
        %v324 = vsel %vm244, %v270, 0.0
        %v325 = vrot.slane %v324, 4
        %v326 = vadd.f32 %v324, %v325
        %v327 = vrot.slane %v326, 2
        %v328 = vadd.f32 %v326, %v327
        %v329 = vrot.slane %v328, 1
        %v330 = vadd.f32 %v328, %v329
        %v331 = vmul.f32 %v270, %v323
        %v332 = vsel %vm244, %v331, 0.0
        %v333 = vrot.slane %v332, 4
        %v334 = vadd.f32 %v332, %v333
        %v335 = vrot.slane %v334, 2
        %v336 = vadd.f32 %v334, %v335
        %v337 = vrot.slane %v336, 1
        %v338 = vadd.f32 %v336, %v337
        %v339 = vsel %vm244, %v323, 0.0
        %v340 = vrot.slane %v339, 4
        %v341 = vadd.f32 %v339, %v340
        %v342 = vrot.slane %v341, 2
        %v343 = vadd.f32 %v341, %v342
        %v344 = vrot.slane %v343, 1
        %v345 = vadd.f32 %v343, %v344
        %v346 = vld [vmem:[#allocation2] sm:$0x7]
        %vm347 = vcmask 1040384
        %v348 = vsel %vm347, %v288, %v313
        %v349 = vsel %vm244, %v348, %v338
        %v350 = vadd.f32 %v346, %v349
        %351 = vst [vmem:[#allocation2] sm:$0x7] %v350
        %s352 = scalar_lea.vmem [#allocation2], 4
        %v353 = vld [vmem:[%s352] sm:$0x7]
        %v354 = vsel %vm347, %v280, %v305
        %v355 = vsel %vm244, %v354, %v330
        %v356 = vadd.f32 %v353, %v355
        %357 = vst [vmem:[%s352] sm:$0x7] %v356
        %s358 = scalar_lea.vmem [#allocation2], 8
        %v359 = vld [vmem:[%s358] sm:$0x7]
        %v360 = vsel %vm347, %v295, %v320
        %v361 = vsel %vm244, %v360, %v345
        %v362 = vadd.f32 %v359, %v361
        %363 = vst [vmem:[%s358] sm:$0x7] %v362
        // Predicated region
        $region37: #{tpu_custom_call.1} parent=27 // pred_check
          %p364 = pneg %p232
        $region38: #{tpu_custom_call.1} parent=27 // pred_check_branch
          %366 = sbr.rel (%p364) target = $region40
        $region39: #{tpu_custom_call.1} parent=27 // pred_region
          %v367 = vld [vmem:[#allocation2] sm:$0x7]
          %v368 = vld [vmem:[#allocation2 + $0x4] sm:$0x7]
          %v369 = vld [vmem:[#allocation2 + $0x8] sm:$0x7]
          %370 = vst [vmem:[%s231] sm:$0x7] %v367
          %371 = vst [vmem:[%s231 + $0x4] sm:$0x7] %v368
          %372 = vst [vmem:[%s231 + $0x8] sm:$0x7] %v369
        $region40: #{tpu_custom_call.1} parent=27 // pred_fallthru
          _
        %p373 = scmp.lt.s32.totalorder %s21, 1
        %s374 = scalar_select %p373, %s21, 1
        %p375 = scmp.lt.s32.totalorder %s22, 0
        %s376 = scalar_select %p375, %s22, 0
        %s377 = smul.addr %s376, 3
        %s378 = smul.addr %s374, 3
        %s379 = sadd.s32 %s377, %s378
        %s380 = smul.addr %s379, 4
        %s381 = scalar_lea.vmem %s2, %s380
        // Predicated region
        $region41: #{tpu_custom_call.1} parent=27 // pred_check
          %p382 = pneg %p115
        $region42: #{tpu_custom_call.1} parent=27 // pred_check_branch
          %384 = sbr.rel (%p382) target = $region44
        $region43: #{tpu_custom_call.1} parent=27 // pred_region
          _
        $region44: #{tpu_custom_call.1} parent=27 // pred_fallthru
          _
      $region28: #{tpu_custom_call.1} parent=5 // pred_fallthru
        _
      %p385 = scmp.le.s32.totalorder 2, %s11
      // Predicated region
      $region45: #{tpu_custom_call.1} parent=5 // pred_check
        %p386 = pneg %p385
      $region46: #{tpu_custom_call.1} parent=5 // pred_check_branch
        %388 = sbr.rel (%p386) target = $region48
      $region47: #{tpu_custom_call.1} parent=5 // pred_region
        %s389 = ssub.s32 %s11, 2
        // Predicated region
        $region49: #{tpu_custom_call.1} parent=47 // pred_check
          %p390 = pneg %p121
        $region50: #{tpu_custom_call.1} parent=47 // pred_check_branch
          %392 = sbr.rel (%p390) target = $region52
        $region51: #{tpu_custom_call.1} parent=47 // pred_region
          %p393 = scmp.lt.s32.totalorder %s24, 1
          %s394 = scalar_select %p393, %s24, 1
          %p395 = scmp.lt.s32.totalorder %s25, 0
          %s396 = scalar_select %p395, %s25, 0
          %s397 = smul.addr %s396, 3
          %s398 = smul.addr %s394, 3
          %s399 = sadd.s32 %s397, %s398
          %s400 = smul.addr %s399, 4
          %s401 = scalar_lea.vmem %s2, %s400
        $region52: #{tpu_custom_call.1} parent=47 // pred_fallthru
          _
      $region48: #{tpu_custom_call.1} parent=5 // pred_fallthru
        _
    $region6: #{tpu_custom_call.1} parent=1 // loop_footer
      %s15 = sadd.s32 1, %s11
    $region7: #{tpu_custom_call.1} parent=1 // loop_footer_branch
      %10 = sbr.rel target = $region3
    $region8: #{tpu_custom_call.1} parent=1 // loop_exit
      _
    %402 = vsyncpa [#allocation4], 1
    %s403 = scalar_lea.sflag [#allocation4], 1
    %404 = vsyncpa %s403, 1

</llo_original>
